<compile_context>
chip_gen: v5e
topology: v5e:2x2
jax: 0.10.0
libtpu: 0.0.40
codegen_flags: <defaults>
</compile_context>

<pallas_src>
import numpy as np
import jax
import jax.numpy as jnp
from jax import lax
from jax.experimental import pallas as pl
from jax.experimental.pallas import tpu as pltpu


def _probe_roll_sign():
    """Empirically determine pltpu.roll's rotation convention.

    Returns +1 if pltpu.roll(x, s) == np.roll(x, s) (out[i] = x[i - s]), else -1.
    Only the direction matters for the conv taps (wrap positions are masked anyway).
    """
    def k(x_ref, o_ref):
        o_ref[...] = pltpu.roll(x_ref[...], 1, 1)

    x = jnp.broadcast_to(jnp.arange(128, dtype=jnp.float32), (8, 128))
    y = pl.pallas_call(k, out_shape=jax.ShapeDtypeStruct((8, 128), jnp.float32))(x)
    v = float(np.asarray(jax.block_until_ready(y))[0, 1])
    if v == 0.0:
        return 1
    if v == 2.0:
        return -1
    raise ValueError(f"unexpected pltpu.roll behaviour (probe value {v})")


def build_sample_forward(B, c_in, c_out, H, W, num_groups, n_heads, n_res, stride,
                         n_imgs, roll_sign):
    """Returns (forward, pack_params).

    forward(x_nchw, w_slab, vec_slab, masks, sel) -> (B, c_out, H//stride, W//stride)
    pack_params(res_torch, attn_torch, down_torch) -> the four slab arrays.
    """
    assert c_in <= c_out and c_out % num_groups == 0 and c_out % n_heads == 0
    assert B % n_imgs == 0
    HW = H * W
    L = n_imgs * HW
    Hs, Ws = H // stride, W // stride
    HW_ds = Hs * Ws
    emb = c_out // n_heads
    eps = 1e-5
    K_IM = 9 * c_out                       # im2col width (input channels padded to c_out)
    QCHUNK = min(64, HW)
    assert HW % QCHUNK == 0
    grid_b = B // n_imgs
    tap_off = [(dy - 1) * W + (dx - 1) for dy in range(3) for dx in range(3)]
    f32, bf16 = jnp.float32, jnp.bfloat16

    # ---- slab layouts (shared by the host packer and the kernel) -----------------------------
    W_OFF, row = {}, 0
    for r in range(n_res):
        W_OFF[f"comb{r}"] = row; row += 2 * c_out          # fused conv1 + 1x1 skip
        W_OFF[f"w2_{r}"] = row; row += c_out
    W_OFF["down"] = row; row += c_out
    W_OFF["qkv"] = row; row += 3 * c_out
    W_OFF["proj"] = row; row += c_out
    W_ROWS = row                                           # 88

    V_OFF, col = {}, 0
    for r in range(n_res):
        for nm in (f"bcomb{r}", f"g1_{r}", f"be1_{r}", f"b2_{r}", f"g2_{r}", f"be2_{r}"):
            V_OFF[nm] = col; col += 1
    for nm in ("bqkv", "bproj", "bdown"):
        V_OFF[nm] = col; col += 1
    V_OFF["gm"] = col; col += c_out
    V_COLS = col                                           # 23
    V_ROWS = 3 * c_out                                     # 24

    # ---- host-side parameter packing ----------------------------------------------------------
    def pack_params(res_params, attn_params, down_params):
        wsl = np.zeros((W_ROWS, K_IM), np.float32)
        vsl = np.zeros((V_ROWS, V_COLS), np.float32)

        def conv_mat(w):  # (co, ci, 3, 3) -> (co, 9*c_out), columns ordered (dy, dx, cin)
            w = np.asarray(w, np.float32)
            co, ci = w.shape[0], w.shape[1]
            wp = np.zeros((co, c_out, 3, 3), np.float32)
            wp[:, :ci] = w
            return wp.transpose(0, 2, 3, 1).reshape(co, K_IM)

        for r, p in enumerate(res_params):
            r0 = W_OFF[f"comb{r}"]
            wsl[r0:r0 + c_out] = conv_mat(p["w1"])
            sk = np.asarray(p["wsk"], np.float32)[:, :, 0, 0]          # (c_out, cin)
            wsl[r0 + c_out:r0 + 2 * c_out, 4 * c_out:4 * c_out + sk.shape[1]] = sk
            r1 = W_OFF[f"w2_{r}"]
            wsl[r1:r1 + c_out] = conv_mat(p["w2"])
            vsl[0:2 * c_out, V_OFF[f"bcomb{r}"]] = np.concatenate(
                [np.asarray(p["b1"], np.float32), np.asarray(p["bsk"], np.float32)])
            for nm in ("g1", "be1", "b2", "g2", "be2"):
                vsl[0:c_out, V_OFF[f"{nm}_{r}"]] = np.asarray(p[nm], np.float32)

        # attention (softmax scale folded into the q rows of wqkv/bqkv)
        scale = 1.0 / float(np.sqrt(emb))
        wq = np.asarray(attn_params["wqkv"], np.float32)[:, :, 0, 0].copy()
        bq = np.asarray(attn_params["bqkv"], np.float32).copy()
        wq[:c_out] *= scale
        bq[:c_out] *= scale
        wsl[W_OFF["qkv"]:W_OFF["qkv"] + 3 * c_out, 0:c_out] = wq
        vsl[0:3 * c_out, V_OFF["bqkv"]] = bq
        wsl[W_OFF["proj"]:W_OFF["proj"] + c_out, 0:c_out] = \
            np.asarray(attn_params["wproj"], np.float32)[:, :, 0, 0]
        vsl[0:c_out, V_OFF["bproj"]] = np.asarray(attn_params["bproj"], np.float32)

        # downsample conv
        wsl[W_OFF["down"]:W_OFF["down"] + c_out] = conv_mat(down_params["w"])
        vsl[0:c_out, V_OFF["bdown"]] = np.asarray(down_params["b"], np.float32)

        # group-average matrix (includes 1/(H*W*channels_per_group))
        cpg = c_out // num_groups
        gid = np.arange(c_out) // cpg
        gm = (gid[:, None] == gid[None, :]).astype(np.float32) / float(HW * cpg)
        vsl[0:c_out, V_OFF["gm"]:V_OFF["gm"] + c_out] = gm

        # 3x3-tap boundary masks (per image position, tiled over the folded images)
        pos = np.arange(HW)
        rw, cl = pos // W, pos % W
        m9 = np.zeros((9, HW), np.float32)
        k = 0
        for dy in (-1, 0, 1):
            for dx in (-1, 0, 1):
                m9[k] = ((rw + dy >= 0) & (rw + dy < H) & (cl + dx >= 0) & (cl + dx < W))
                k += 1
        masks = np.tile(m9, (1, n_imgs))

        # stride x stride one-hot column selector for the downsample conv
        sel = np.zeros((HW, HW_ds), np.float32)
        for q in range(HW_ds):
            sel[(q // Ws) * stride * W + (q % Ws) * stride, q] = 1.0

        return (jnp.asarray(wsl), jnp.asarray(vsl), jnp.asarray(masks),
                jnp.asarray(sel, dtype=jnp.bfloat16))

    # ---- fused kernel --------------------------------------------------------------------------
    def kernel(x_ref, w_ref, vec_ref, mask_ref, sel_ref, o_ref):
        Wsl = w_ref[...]                               # (W_ROWS, 9*c_out) f32
        vs = vec_ref[...]                              # (V_ROWS, V_COLS)  f32
        masks = mask_ref[...]                          # (9, L)            f32
        sel = sel_ref[...]                             # (HW, HW_ds)       bf16

        def wmat(name, rows, cols=K_IM):               # weight slice -> bf16 MXU operand
            r0 = W_OFF[name]
            return Wsl[r0:r0 + rows, 0:cols].astype(bf16)

        def vcol(name, rows):                          # (rows, 1) f32 vector
            c = V_OFF[name]
            return vs[0:rows, c:c + 1]

        gm = vs[0:c_out, V_OFF["gm"]:V_OFF["gm"] + c_out]

        def conv3x3(x, w_bf16):
            # x: (c_out, L) f32.  Single im2col matmul  W(rows, 9*c_out) @ patches(9*c_out, L).
            taps = []
            for k, off in enumerate(tap_off):
                if off == 0:
                    t = x
                else:
                    t = pltpu.roll(x, (-roll_sign * off) % L, 1)     # XLU lane rotation
                if k != 4:                                           # center tap never leaves image
                    t = t * masks[k:k + 1, :]
                taps.append(t)
            patches = jnp.concatenate(taps, axis=0).astype(bf16)     # (9*c_out, L)
            return jnp.dot(w_bf16, patches, preferred_element_type=f32)

        def group_norm(x, gamma, beta, relu):
            # Per-image stats: lane-reduce first, then the tiny (C,C)@(C,2) group average.
            parts = []
            for b in range(n_imgs):
                xb = x[:, b * HW:(b + 1) * HW]
                s = jnp.sum(xb, axis=1, keepdims=True)
                s2 = jnp.sum(xb * xb, axis=1, keepdims=True)
                gstats = jnp.dot(gm, jnp.concatenate([s, s2], axis=1),
                                 preferred_element_type=f32)          # (C, 2)
                mean, ex2 = gstats[:, 0:1], gstats[:, 1:2]
                var = ex2 - mean * mean
                sc = lax.rsqrt(var + eps) * gamma
                parts.append(xb * sc + (beta - mean * sc))
            y = parts[0] if n_imgs == 1 else jnp.concatenate(parts, axis=1)
            return jnp.maximum(y, 0.0) if relu else y

        if n_imgs == 1:
            x = x_ref[0]                                              # (c_out, HW)
        else:
            x = jnp.concatenate([x_ref[i] for i in range(n_imgs)], axis=-1)   # (c_out, L)

        # ---- ResNet blocks: conv1 and the 1x1 skip fused into one matmul ----
        for r in range(n_res):
            y = conv3x3(x, wmat(f"comb{r}", 2 * c_out)) + vcol(f"bcomb{r}", 2 * c_out)
            h = group_norm(y[0:c_out], vcol(f"g1_{r}", c_out), vcol(f"be1_{r}", c_out), relu=True)
            h = conv3x3(h, wmat(f"w2_{r}", c_out)) + vcol(f"b2_{r}", c_out)
            h = group_norm(h, vcol(f"g2_{r}", c_out), vcol(f"be2_{r}", c_out), relu=False)
            x = jnp.maximum(h + y[c_out:2 * c_out], 0.0)

        # ---- Attention (qkv 1x1 conv, chunked softmax(QK^T)V per head/image, proj 1x1 conv) ----
        qkv = jnp.dot(wmat("qkv", 3 * c_out, c_out), x.astype(bf16),
                      preferred_element_type=f32) + vcol("bqkv", 3 * c_out)       # (3C, L) f32
        ctx_imgs = []
        for b in range(n_imgs):
            sl = slice(b * HW, (b + 1) * HW)
            heads = []
            for hh in range(n_heads):
                # QK^T stays f32 (same transposed-lhs dot form as the validated kernel).
                q = qkv[hh * emb:(hh + 1) * emb, sl]                              # (emb, HW)
                k = qkv[c_out + hh * emb:c_out + (hh + 1) * emb, sl]
                v = qkv[2 * c_out + hh * emb:2 * c_out + (hh + 1) * emb, sl].astype(bf16)
                chunks = []
                for c0 in range(0, HW, QCHUNK):
                    logits = lax.dot_general(q[:, c0:c0 + QCHUNK], k,
                                             (((0,), (0,)), ((), ())),
                                             preferred_element_type=f32)          # (QCHUNK, HW)
                    mx = jnp.max(logits, axis=-1, keepdims=True)
                    p = jnp.exp(logits - mx)
                    inv = pl.reciprocal(jnp.sum(p, axis=-1, keepdims=True), approx=True)
                    probs = (p * inv).astype(bf16)
                    # ctx = V . probs^T : natively supported A @ B^T MXU form (bf16).
                    chunks.append(lax.dot_general(v, probs, (((1,), (1,)), ((), ())),
                                                  preferred_element_type=f32))    # (emb, QCHUNK)
                heads.append(jnp.concatenate(chunks, axis=1))                     # (emb, HW)
            ctx_imgs.append(jnp.concatenate(heads, axis=0))                       # (C, HW)
        ctx = ctx_imgs[0] if n_imgs == 1 else jnp.concatenate(ctx_imgs, axis=1)   # (C, L)
        x = jnp.dot(wmat("proj", c_out, c_out), ctx.astype(bf16),
                    preferred_element_type=f32) + vcol("bproj", c_out)

        # ---- Downsample Conv2d(3x3, stride, pad 1): strided outputs picked by one-hot selector ----
        full = conv3x3(x, wmat("down", c_out))                                    # (C, L), no bias
        outs = [jnp.dot(full[:, b * HW:(b + 1) * HW].astype(bf16), sel,
                        preferred_element_type=f32) for b in range(n_imgs)]
        res = (outs[0] if n_imgs == 1 else jnp.concatenate(outs, axis=1)) + vcol("bdown", c_out)
        if len(o_ref.shape) == 3:
            o_ref[0] = res                                                        # (C, HW_ds)
        else:
            o_ref[...] = res                                                      # (C, n_imgs*HW_ds)

    # ---- wrapper -------------------------------------------------------------------------------
    def forward(x_nchw, w_slab, vec_slab, masks, sel):
        # Pad input channels to c_out so every im2col has the same 8-sublane-aligned layout.
        xp = jnp.pad(x_nchw.reshape(B, c_in, HW).astype(jnp.float32),
                     ((0, 0), (0, c_out - c_in), (0, 0)))
        in_specs = [
            pl.BlockSpec((n_imgs, c_out, HW), lambda g: (g, 0, 0)),
            pl.BlockSpec(w_slab.shape, lambda g: (0, 0)),
            pl.BlockSpec(vec_slab.shape, lambda g: (0, 0)),
            pl.BlockSpec(masks.shape, lambda g: (0, 0)),
            pl.BlockSpec(sel.shape, lambda g: (0, 0)),
        ]
        if n_imgs == B:   # single grid step, batch folded onto lanes -> lane-dense (8,128) store
            out_shape = jax.ShapeDtypeStruct((c_out, B * HW_ds), jnp.float32)
            out_specs = pl.BlockSpec((c_out, B * HW_ds), lambda g: (0, 0))
        else:             # one image per grid step (two TensorCores on v7x)
            out_shape = jax.ShapeDtypeStruct((B, c_out, HW_ds), jnp.float32)
            out_specs = pl.BlockSpec((1, c_out, HW_ds), lambda g: (g, 0, 0))
        out = pl.pallas_call(
            kernel,
            out_shape=out_shape,
            grid=(grid_b,),
            in_specs=in_specs,
            out_specs=out_specs,
            compiler_params=pltpu.CompilerParams(dimension_semantics=("parallel",)),
        )(xp, w_slab, vec_slab, masks, sel)
        if n_imgs == B:
            out = out.reshape(c_out, B, HW_ds).transpose(1, 0, 2)
        return out.reshape(B, c_out, Hs, Ws)

    return forward, pack_params


if __name__ == "__main__":
    B, C_IN, C_OUT, H, W = 2, 4, 8, 16, 16
    NUM_GROUPS, N_HEADS, RES_BLOCKS, STRIDE = 4, 2, 2, 2

    key = jax.random.PRNGKey(0)
    keys = iter(jax.random.split(key, 64))

    def nrm(shape, s=0.05):
        return (s * jax.random.normal(next(keys), shape)).astype(jnp.float32)

    # PyTorch-layout parameters (also used by the pure-JAX reference) ---------------------------
    res_torch = []
    cin = C_IN
    for _ in range(RES_BLOCKS):
        res_torch.append(dict(
            w1=nrm((C_OUT, cin, 3, 3)), b1=nrm((C_OUT,)),
            g1=jnp.ones((C_OUT,), jnp.float32), be1=jnp.zeros((C_OUT,), jnp.float32),
            w2=nrm((C_OUT, C_OUT, 3, 3)), b2=nrm((C_OUT,)),
            g2=jnp.ones((C_OUT,), jnp.float32), be2=jnp.zeros((C_OUT,), jnp.float32),
            wsk=nrm((C_OUT, cin, 1, 1)), bsk=nrm((C_OUT,)),
        ))
        cin = C_OUT
    attn_torch = dict(wqkv=nrm((3 * C_OUT, C_OUT, 1, 1)), bqkv=nrm((3 * C_OUT,)),
                      wproj=nrm((C_OUT, C_OUT, 1, 1)), bproj=nrm((C_OUT,)))
    down_torch = dict(w=nrm((C_OUT, C_OUT, 3, 3)), b=nrm((C_OUT,)))

    x_nchw = jax.random.normal(next(keys), (B, C_IN, H, W)).astype(jnp.float32)

    # Device-aware batch handling: fold batch onto lanes on single-TC chips (v5e/v6e),
    # keep one image per grid step on v7x so both TensorCores are used.
    kind = jax.devices()[0].device_kind.lower()
    n_imgs = 1 if ("v7" in kind or "7x" in kind) else B
    roll_sign = _probe_roll_sign()

    forward, pack_params = build_sample_forward(
        B, C_IN, C_OUT, H, W, NUM_GROUPS, N_HEADS, RES_BLOCKS, STRIDE, n_imgs, roll_sign)
    w_slab, vec_slab, masks, sel = pack_params(res_torch, attn_torch, down_torch)

    out = jax.jit(forward)(x_nchw, w_slab, vec_slab, masks, sel)
    out = jax.block_until_ready(out)

    # Pure-JAX reference of the PyTorch module (correctness check) ------------------------------
    def ref_forward(x):
        def conv(x, w, b, s, pad):
            y = lax.conv_general_dilated(x, w, (s, s), ((pad, pad), (pad, pad)),
                                         dimension_numbers=('NCHW', 'OIHW', 'NCHW'))
            return y + b.reshape(1, -1, 1, 1)

        def gn(x, g, bt):
            Bv, C, Hh, Ww = x.shape
            xg = x.reshape(Bv, NUM_GROUPS, C // NUM_GROUPS, Hh, Ww)
            mu = jnp.mean(xg, axis=(2, 3, 4), keepdims=True)
            var = jnp.var(xg, axis=(2, 3, 4), keepdims=True)
            xn = ((xg - mu) / jnp.sqrt(var + 1e-5)).reshape(Bv, C, Hh, Ww)
            return xn * g.reshape(1, -1, 1, 1) + bt.reshape(1, -1, 1, 1)

        for p in res_torch:
            h = conv(x, p['w1'], p['b1'], 1, 1)
            h = jax.nn.relu(gn(h, p['g1'], p['be1']))
            h = conv(h, p['w2'], p['b2'], 1, 1)
            h = gn(h, p['g2'], p['be2'])
            x = jax.nn.relu(h + conv(x, p['wsk'], p['bsk'], 1, 0))

        Bv, C, Hh, Ww = x.shape
        emb = C // N_HEADS
        qkv = conv(x, attn_torch['wqkv'], attn_torch['bqkv'], 1, 0)
        qkv = qkv.reshape(Bv, 3 * N_HEADS, emb, Hh * Ww).transpose(0, 1, 3, 2)
        q, k, v = qkv[:, :N_HEADS], qkv[:, N_HEADS:2 * N_HEADS], qkv[:, 2 * N_HEADS:]
        attn = jax.nn.softmax(jnp.einsum('bhqe,bhke->bhqk', q, k) / (emb ** 0.5), axis=-1)
        o = jnp.einsum('bhqk,bhke->bhqe', attn, v)
        o = o.transpose(0, 2, 1, 3).reshape(Bv, Hh * Ww, C).transpose(0, 2, 1).reshape(Bv, C, Hh, Ww)
        x = conv(o, attn_torch['wproj'], attn_torch['bproj'], 1, 0)
        return conv(x, down_torch['w'], down_torch['b'], STRIDE, 1)

    ref = jax.block_until_ready(ref_forward(x_nchw))

    assert out.shape == (B, C_OUT, H // STRIDE, W // STRIDE), out.shape
    assert bool(jnp.all(jnp.isfinite(out)))
    np.testing.assert_allclose(np.asarray(out), np.asarray(ref), rtol=2e-2, atol=2e-2)
    print("KERNEL_OK")
</pallas_src>

<mosaic_0001>
module attributes {stable_mosaic.version = 11 : i64} {
  func.func @k(%arg0: memref<8x128xf32, #tpu.memory_space<vmem>>, %arg1: memref<8x128xf32, #tpu.memory_space<vmem>>) attributes {dimension_semantics = [], scalar_prefetch = 0 : i64, scratch_operands = 0 : i64, tpu.core_type = #tpu.core_type<tc>} {
    %c0 = arith.constant 0 : index
    %c0_0 = arith.constant 0 : index
    %0 = vector.load %arg0[%c0, %c0_0] : memref<8x128xf32, #tpu.memory_space<vmem>>, vector<8x128xf32>
    %c1_i32 = arith.constant 1 : i32
    %1 = tpu.dynamic_rotate %0 by %c1_i32 dim 1 : vector<8x128xf32>, i32 -> vector<8x128xf32>
    %c0_1 = arith.constant 0 : index
    %c0_2 = arith.constant 0 : index
    %2 = vector.load %arg1[%c0_1, %c0_2] : memref<8x128xf32, #tpu.memory_space<vmem>>, vector<8x128xf32>
    tpu.vector_store %arg1[%c0_1, %c0_2], %1 {strides = array<i32>} : memref<8x128xf32, #tpu.memory_space<vmem>>, vector<8x128xf32>,
    return
  }
}

</mosaic_0001>

<llo_original>
// kernel: tpu_custom_call.1
$region0: #{tpu_custom_call.1}
  #allocation0 [shape = 'u32[]', space=smem, size = 0x4, offset = 0x4, fixed_abs, tag = 'smem constant byte address 0x4 - core index']
  #allocation1 [shape = 'u32[72,128]{1,0:T(1,128)}', space=vmem, size = 0x9000, scoped, tag = 'internal scratch']
  %s0 = inlined_call_operand.hbm [shape: f32[8,128], index: 0, kind: input, shape index: {}]
  %s1 = inlined_call_operand.hbm [shape: f32[8,128], index: 1, kind: output, shape index: {}]
  %s2 = sld [smem:[#allocation0]]
  $region18: #{tpu_custom_call.1} parent=0
    _
  %s4 = ssub.s32 1, %s2
  %s5 = scalar_select 0, %s4, %s2
  $region1: #{tpu_custom_call.1} parent=0
    #allocation2 [shape = 'u8[4096]{0}', space=vmem, size = 0x1000, scoped, tag = 'input window, operand 0, single buffered']
    #allocation3 [shape = 's32[1]{0}', space=sflag, size = 0x4, scoped, tag = 'scoped memory for tpu_custom_call.1']
    #allocation4 [shape = 's32[1]{0}', space=sflag, size = 0x4, scoped, tag = 'scoped memory for tpu_custom_call.1']
    #allocation5 [shape = 'u8[4096]{0}', space=vmem, size = 0x1000, scoped, tag = 'output window, operand 0, single buffered']
    %6 = vsyncpa [#allocation3], 0
    %7 = vsyncpa [#allocation4], 0
    // Predicated region
    $region2: #{tpu_custom_call.1} parent=1 // pred_check
      _
    $region3: #{tpu_custom_call.1} parent=1 // pred_check_branch
      %9 = sbr.rel (0) target = $region5
    $region4: #{tpu_custom_call.1} parent=1 // pred_region
      %11 = vsyncadd [#allocation3], 0
      %s13 = sshll.u32 %s0, 4
      %s14 = int_to_ptr.hbm [resolvable:$true] %s13
      %s15 = sshll.u32 [#allocation2], 4
      %s16 = int_to_ptr.vmem [resolvable:$true] %s15
      %18 = dma.hbm_to_vmem [thread:$0]  %s14, 128, %s16, [#allocation3]
    $region5: #{tpu_custom_call.1} parent=1 // pred_fallthru
      _
    // Predicated region
    $region6: #{tpu_custom_call.1} parent=1 // pred_check
      _
    $region7: #{tpu_custom_call.1} parent=1 // pred_check_branch
      %20 = sbr.rel (0) target = $region9
    $region8: #{tpu_custom_call.1} parent=1 // pred_region
      %22 = dma.done [#allocation3], 128
    $region9: #{tpu_custom_call.1} parent=1 // pred_fallthru
      _
    %v23 = vld [vmem:[#allocation2] sm:$0xff]
    %24 = vrot.lane.b32.xlu0 %v23, 1
    %v25 = vpop.permute.xlu0 %24
    %26 = vst [vmem:[#allocation5] sm:$0xff] %v25
    // Predicated region
    $region10: #{tpu_custom_call.1} parent=1 // pred_check
      _
    $region11: #{tpu_custom_call.1} parent=1 // pred_check_branch
      %28 = sbr.rel (0) target = $region13
    $region12: #{tpu_custom_call.1} parent=1 // pred_region
      %30 = vsyncadd [#allocation4], 0
      %s32 = sshll.u32 [#allocation5], 4
      %s33 = int_to_ptr.vmem [resolvable:$true] %s32
      %s34 = sshll.u32 %s1, 4
      %s35 = int_to_ptr.hbm [resolvable:$true] %s34
      %37 = dma.vmem_to_hbm [thread:$0]  %s33, 128, %s35, [#allocation4]
    $region13: #{tpu_custom_call.1} parent=1 // pred_fallthru
      _
    // Predicated region
    $region14: #{tpu_custom_call.1} parent=1 // pred_check
      _
    $region15: #{tpu_custom_call.1} parent=1 // pred_check_branch
      %39 = sbr.rel (0) target = $region17
    $region16: #{tpu_custom_call.1} parent=1 // pred_region
      %41 = dma.done [#allocation4], 128
    $region17: #{tpu_custom_call.1} parent=1 // pred_fallthru
      _
    %42 = vsyncpa [#allocation3], 1
    %43 = vsyncpa [#allocation4], 1

</llo_original>
